<compile_context>
chip_gen: v7x
topology: tpu7x:2x2x1
jax: 0.10.0
libtpu: 0.0.40
codegen_flags: <defaults>
</compile_context>

<pallas_src>
import jax
import jax.numpy as jnp
from jax.experimental import pallas as pl
from jax.experimental.pallas import tpu as pltpu


def mlp_kernel(x_ref, wb_ref, b2_ref, o_ref):
    # Layout inside the kernel:
    #   x_ref : (1, Bpad)   -- batch on lanes
    #   wb_ref: (H, 3)      -- [:,0]=w1, [:,1]=b1, [:,2]=w2 (hidden on sublanes)
    #   b2_ref: (1,)        -- SMEM scalar
    #   o_ref : (1, Bpad)   -- lane-dense output
    x_row = x_ref[...]                                   # (1, Bpad)
    w1c = wb_ref[:, 0:1]                                 # (H, 1) static slice (free)
    b1c = wb_ref[:, 1:2]                                 # (H, 1)
    w2c = wb_ref[:, 2:3]                                 # (H, 1)

    # Layer 1 (K=1): pure VPU broadcast multiply-add + ReLU -> (H, Bpad)
    h = jnp.maximum(w1c * x_row + b1c, 0.0)

    # Layer 2 (N=1): VPU multiply + XLU sublane reduce -> (1, Bpad)
    y = jnp.sum(h * w2c, axis=0, keepdims=True)

    # Scalar bias from SMEM, lane-dense store.
    o_ref[...] = (y + b2_ref[0]).astype(o_ref.dtype)


def pack_params(w1, b1, w2, b2):
    """One-time parameter layout prep (hoisted out of the forward pass).

    w1: (1, H)  b1: (1, H)  w2: (H, 1)  b2: (1, 1)
    returns: wb (H, 3) f32, b2_s (1,) f32
    """
    n_features, H = w1.shape
    n_output = w2.shape[1]
    assert n_features == 1 and n_output == 1, "kernel specialized to Net(1, H, 1)"
    wb = jnp.concatenate(
        [w1.reshape(H, 1), b1.reshape(H, 1), w2.reshape(H, 1)], axis=1
    ).astype(jnp.float32)                                # (H, 3)
    b2_s = b2.reshape(1).astype(jnp.float32)             # (1,) -> 1-D SMEM
    return wb, b2_s


@jax.jit
def net_forward(x, wb, b2_s):
    """Fused forward pass of Net as a single Pallas TPU kernel.

    x:    (B, 1) f32
    wb:   (H, 3) f32 packed [w1 | b1 | w2]
    b2_s: (1,)   f32
    returns (B, 1) f32
    """
    B = x.shape[0]
    H = wb.shape[0]

    # Pad batch up to a full 128-lane vreg width (round-up already yields >=128).
    B_pad = ((B + 127) // 128) * 128

    # Lane-dense layout: batch on lanes.
    x_lane = jnp.pad(x[:, 0], (0, B_pad - B)).reshape(1, B_pad)   # (1, Bpad)

    full = lambda shape: pl.BlockSpec(shape, lambda: tuple(0 for _ in shape))

    y_lane = pl.pallas_call(
        mlp_kernel,
        out_shape=jax.ShapeDtypeStruct((1, B_pad), jnp.float32),
        grid=(),
        in_specs=[
            full((1, B_pad)),                                     # x
            full((H, 3)),                                         # packed w1|b1|w2
            pl.BlockSpec(memory_space=pltpu.MemorySpace.SMEM),    # b2 scalar
        ],
        out_specs=full((1, B_pad)),
        cost_estimate=pl.CostEstimate(
            flops=4 * B_pad * H,                         # two mul-add layers
            transcendentals=0,
            bytes_accessed=(2 * B_pad + 3 * H + 1) * 4,  # ~1.5 KiB logical
        ),
    )(x_lane, wb, b2_s)

    # Back to torch-style (B, 1); drop the padded batch lanes.
    return y_lane[0, :B].reshape(B, 1)


def net_reference(x, w1, b1, w2, b2):
    h = jnp.maximum(x @ w1 + b1, 0.0)
    return h @ w2 + b2


if __name__ == "__main__":
    # Shapes implied by the script: x = linspace(-1, 1, 100)[:, None] -> (100, 1)
    # Net(n_features=1, n_hidden=32, n_output=1)
    n_features, n_hidden, n_output = 1, 32, 1
    batch = 100

    # Input: same as the torch script.
    x = jnp.linspace(-1.0, 1.0, batch, dtype=jnp.float32).reshape(batch, 1)

    # Deterministic parameter init (uniform, like torch.nn.Linear default bounds).
    key = jax.random.PRNGKey(0)
    k1, k2, k3, k4 = jax.random.split(key, 4)
    bound1 = 1.0 / (n_features ** 0.5)
    bound2 = 1.0 / (n_hidden ** 0.5)
    w1 = jax.random.uniform(k1, (n_features, n_hidden), jnp.float32, -bound1, bound1)
    b1 = jax.random.uniform(k2, (1, n_hidden), jnp.float32, -bound1, bound1)
    w2 = jax.random.uniform(k3, (n_hidden, n_output), jnp.float32, -bound2, bound2)
    b2 = jax.random.uniform(k4, (1, n_output), jnp.float32, -bound2, bound2)

    # One-time parameter layout prep (not repeated per forward call).
    wb, b2_s = pack_params(w1, b1, w2, b2)

    # TODO(synk): if driven by the original training loop, fuse fwd+loss+bwd+update
    # into one jitted step to amortize per-call launch/DMA latency.
    y = net_forward(x, wb, b2_s)
    y = jax.block_until_ready(y)

    y_ref = net_reference(x, w1, b1, w2, b2)
    assert y.shape == (batch, n_output), y.shape
    assert jnp.allclose(y, y_ref, atol=1e-5, rtol=1e-5), "mismatch vs reference"

    print("KERNEL_OK")
</pallas_src>

<mosaic_0001>
module attributes {stable_mosaic.version = 11 : i64} {
  func.func @mlp_kernel(%arg0: memref<1x128xf32, #tpu.memory_space<vmem>>, %arg1: memref<32x3xf32, #tpu.memory_space<vmem>>, %arg2: memref<1xf32, #tpu.memory_space<smem>>, %arg3: memref<1x128xf32, #tpu.memory_space<vmem>>) attributes {dimension_semantics = [], scalar_prefetch = 0 : i64, scratch_operands = 0 : i64, tpu.core_type = #tpu.core_type<tc>} {
    %c0 = arith.constant 0 : index
    %c0_0 = arith.constant 0 : index
    %0 = vector.load %arg0[%c0, %c0_0] : memref<1x128xf32, #tpu.memory_space<vmem>>, vector<1x128xf32>
    %c0_1 = arith.constant 0 : index
    %c0_2 = arith.constant 0 : index
    %1 = vector.load %arg1[%c0_1, %c0_2] : memref<32x3xf32, #tpu.memory_space<vmem>>, vector<32x1xf32>
    %c0_3 = arith.constant 0 : index
    %c1 = arith.constant 1 : index
    %2 = vector.load %arg1[%c0_3, %c1] : memref<32x3xf32, #tpu.memory_space<vmem>>, vector<32x1xf32>
    %c0_4 = arith.constant 0 : index
    %c2 = arith.constant 2 : index
    %3 = vector.load %arg1[%c0_4, %c2] : memref<32x3xf32, #tpu.memory_space<vmem>>, vector<32x1xf32>
    %4 = vector.broadcast %1 : vector<32x1xf32> to vector<32x128xf32>
    %5 = vector.broadcast %0 : vector<1x128xf32> to vector<32x128xf32>
    %6 = arith.mulf %4, %5 : vector<32x128xf32>
    %7 = vector.broadcast %2 : vector<32x1xf32> to vector<32x128xf32>
    %8 = arith.addf %6, %7 : vector<32x128xf32>
    %cst = arith.constant 0.000000e+00 : f32
    %9 = vector.broadcast %cst : f32 to vector<32x128xf32>
    %10 = arith.maximumf %8, %9 : vector<32x128xf32>
    %11 = vector.broadcast %3 : vector<32x1xf32> to vector<32x128xf32>
    %12 = arith.mulf %10, %11 : vector<32x128xf32>
    %cst_5 = arith.constant dense<0.000000e+00> : vector<128xf32>
    %13 = vector.multi_reduction <add>, %12, %cst_5 [0] : vector<32x128xf32> to vector<128xf32>
    %14 = vector.shape_cast %13 : vector<128xf32> to vector<1x128xf32>
    %c0_6 = arith.constant 0 : index
    %15 = memref.load %arg2[%c0_6] : memref<1xf32, #tpu.memory_space<smem>>
    %16 = vector.broadcast %15 : f32 to vector<1x128xf32>
    %17 = arith.addf %14, %16 : vector<1x128xf32>
    %c0_7 = arith.constant 0 : index
    %c0_8 = arith.constant 0 : index
    %18 = vector.load %arg3[%c0_7, %c0_8] : memref<1x128xf32, #tpu.memory_space<vmem>>, vector<1x128xf32>
    tpu.vector_store %arg3[%c0_7, %c0_8], %17 {strides = array<i32>} : memref<1x128xf32, #tpu.memory_space<vmem>>, vector<1x128xf32>,
    return
  }
}

</mosaic_0001>

<llo_original>
// kernel: net_forward.1
$region0: #{net_forward.1}
  #allocation0 [shape = 'u32[]', space=smem, size = 0x4, offset = 0x4, fixed_abs, tag = 'smem constant byte address 0x4 - core index']
  #allocation1 [shape = 'u32[144,128]{1,0:T(1,128)}', space=vmem, size = 0x12000, scoped, tag = 'internal scratch']
  #allocation2 [shape = 'f32[1]{0:T(128)S(6)}', space=smem, size = 0x200, scoped, tag = 'scoped memory for net_forward.1']
  %s0 = inlined_call_operand.vmem [shape: f32[1,128], index: 0, kind: input, shape index: {}]
  %s1 = inlined_call_operand.vmem [shape: f32[32,3], index: 1, kind: input, shape index: {}]
  %s2 = inlined_call_operand.<no memory space> [shape: f32[1], index: 2, kind: input, shape index: {}]
  %s3 = inlined_call_operand.vmem [shape: f32[1,128], index: 3, kind: output, shape index: {}]
  %s4 = sld [smem:[#allocation0]]
  $region22: #{net_forward.1} parent=0
    _
  %s6 = ssub.s32 1, %s4
  %s7 = scalar_select 0, %s6, %s4
  %8 = sst [smem:[#allocation2]] %s2
  // Predicated region
  $region2: #{net_forward.1} parent=0 // pred_check
    _
  $region3: #{net_forward.1} parent=0 // pred_check_branch
    %10 = sbr.rel (0) target = $region5
  $region4: #{net_forward.1} parent=0 // pred_region
    _
  $region5: #{net_forward.1} parent=0 // pred_fallthru
    _
  // Predicated region
  $region6: #{net_forward.1} parent=0 // pred_check
    _
  $region7: #{net_forward.1} parent=0 // pred_check_branch
    %12 = sbr.rel (0) target = $region9
  $region8: #{net_forward.1} parent=0 // pred_region
    _
  $region9: #{net_forward.1} parent=0 // pred_fallthru
    _
  // Predicated region
  $region10: #{net_forward.1} parent=0 // pred_check
    _
  $region11: #{net_forward.1} parent=0 // pred_check_branch
    %14 = sbr.rel (0) target = $region13
  $region12: #{net_forward.1} parent=0 // pred_region
    _
  $region13: #{net_forward.1} parent=0 // pred_fallthru
    _
  %v15 = vld [vmem:[%s0] sm:$0x1]
  %v16 = vld [vmem:[%s1] sm:$0xff]
  %v17 = vld [vmem:[%s1 + $0x8] sm:$0xff]
  %v18 = vld [vmem:[%s1 + $0x10] sm:$0xff]
  %v19 = vld [vmem:[%s1 + $0x18] sm:$0xff]
  %21 = vset.pattern.permute.xlu0 0
  %22 = vperm.xlu0 %21, %v16
  %v23 = vpop.permute.xlu0 %22
  %26 = vset.pattern.permute.xlu0 0
  %27 = vperm.xlu0 %26, %v17
  %v28 = vpop.permute.xlu0 %27
  %31 = vset.pattern.permute.xlu0 0
  %32 = vperm.xlu0 %31, %v18
  %v33 = vpop.permute.xlu0 %32
  %36 = vset.pattern.permute.xlu0 0
  %37 = vperm.xlu0 %36, %v19
  %v38 = vpop.permute.xlu0 %37
  %v41 = vlaneseq
  %v42 = vshrl.u32 %v41, 7
  %v43 = vsub.s32 0, %v42
  %v44 = vrot.slane %v15, %v43
  %v46 = vmul.f32 %v23, %v44
  %v47 = vmul.f32 %v28, %v44
  %v48 = vmul.f32 %v33, %v44
  %v49 = vmul.f32 %v38, %v44
  %50 = vset.pattern.permute.xlu0 1
  %51 = vperm.xlu0 %50, %v16
  %v52 = vpop.permute.xlu0 %51
  %54 = vset.pattern.permute.xlu0 1
  %55 = vperm.xlu0 %54, %v17
  %v56 = vpop.permute.xlu0 %55
  %58 = vset.pattern.permute.xlu0 1
  %59 = vperm.xlu0 %58, %v18
  %v60 = vpop.permute.xlu0 %59
  %62 = vset.pattern.permute.xlu0 1
  %63 = vperm.xlu0 %62, %v19
  %v64 = vpop.permute.xlu0 %63
  %v66 = vadd.f32 %v46, %v52
  %v67 = vadd.f32 %v47, %v56
  %v68 = vadd.f32 %v48, %v60
  %v69 = vadd.f32 %v49, %v64
  %v70 = vmax.f32 %v66, 0.0
  %v71 = vmax.f32 %v67, 0.0
  %v72 = vmax.f32 %v68, 0.0
  %v73 = vmax.f32 %v69, 0.0
  %74 = vset.pattern.permute.xlu0 2
  %75 = vperm.xlu0 %74, %v16
  %v76 = vpop.permute.xlu0 %75
  %78 = vset.pattern.permute.xlu0 2
  %79 = vperm.xlu0 %78, %v17
  %v80 = vpop.permute.xlu0 %79
  %82 = vset.pattern.permute.xlu0 2
  %83 = vperm.xlu0 %82, %v18
  %v84 = vpop.permute.xlu0 %83
  %86 = vset.pattern.permute.xlu0 2
  %87 = vperm.xlu0 %86, %v19
  %v88 = vpop.permute.xlu0 %87
  %v90 = vmul.f32 %v70, %v76
  %v91 = vmul.f32 %v71, %v80
  %v92 = vmul.f32 %v72, %v84
  %v93 = vmul.f32 %v73, %v88
  %v94 = vadd.f32 %v90, %v91
  %v95 = vadd.f32 %v94, %v92
  %v96 = vadd.f32 %v95, %v93
  %v97 = vrot.slane %v96, 4
  %v98 = vadd.f32 %v96, %v97
  %v99 = vrot.slane %v98, 2
  %v100 = vadd.f32 %v98, %v99
  %v101 = vrot.slane %v100, 1
  %v102 = vadd.f32 %v100, %v101
  %s103 = sld [smem:[#allocation2]]
  %v104 = vstv %s103
  %v105 = vadd.f32 %v102, %v104
  %106 = vst [vmem:[%s3] sm:$0x1] %v105
  // Predicated region
  $region14: #{net_forward.1} parent=0 // pred_check
    _
  $region15: #{net_forward.1} parent=0 // pred_check_branch
    %108 = sbr.rel (0) target = $region17
  $region16: #{net_forward.1} parent=0 // pred_region
    _
  $region17: #{net_forward.1} parent=0 // pred_fallthru
    _
  // Predicated region
  $region18: #{net_forward.1} parent=0 // pred_check
    _
  $region19: #{net_forward.1} parent=0 // pred_check_branch
    %110 = sbr.rel (0) target = $region21
  $region20: #{net_forward.1} parent=0 // pred_region
    _
  $region21: #{net_forward.1} parent=0 // pred_fallthru
    _

</llo_original>
